<compile_context>
chip_gen: v7x
topology: tpu7x:2x2x1
jax: 0.10.0
libtpu: 0.0.40
codegen_flags: <defaults>
</compile_context>

<pallas_src>
import jax
import jax.numpy as jnp
import numpy as np
from jax.experimental import pallas as pl
from jax.experimental.pallas import tpu as pltpu

EPS = 1e-5


def basic_block_kernel(lhs1_ref, id_ref, w1_ref, w2_ref, fold_ref, spread_ref,
                       g1_ref, b1_ref, g2_ref, b2_ref, a_ref,
                       out_ref, pbuf):
    # lhs1_ref   : (R, 4*W*C)      bf16  conv1 lhs (4 padded rows per out pair)
    # id_ref     : (R, 2*W*C)      f32   residual identity, pair-packed
    # w1/w2_ref  : (4*W*C, 2*W*C)  bf16  banded block-Toeplitz conv weights
    # fold_ref   : (2*W*C, C)      f32   per-lane -> per-channel fold
    # spread_ref : (C, 2*W*C)      f32   per-channel -> per-lane spread
    # g*/b*      : (1, C)          f32   BN affine params
    # a_ref      : (1, 1)          f32   PReLU scalar (SMEM)
    # out_ref    : (R, 2*W*C)      f32   lane-dense output (128 lanes here)
    # pbuf       : (N, T+2, 2*W*C) f32   VMEM scratch, pair-rows padded by 1
    R, L = out_ref.shape                 # R = N*H/2, L = 2*W*C
    N, Tp2, _ = pbuf.shape
    T = Tp2 - 2                          # H/2
    C = fold_ref.shape[1]
    half = L // 2                        # W*C
    inv_m = 1.0 / (R * (L // C))         # 1 / (N*H*W)

    a = a_ref[0, 0]                      # PReLU slope for x < 0

    def batchnorm(h, g_ref, b_ref):
        # Training-mode BN, single-pass stats (sum + sum-of-squares).
        # NOTE: E[x^2]-mean^2 can cancel if |mean| >> std; fine in f32 at
        # these scales (post-conv activations, small N*H*W).
        s = jnp.sum(h, axis=0, keepdims=True)             # (1, L)
        ss = jnp.sum(h * h, axis=0, keepdims=True)        # (1, L)
        s_c = jnp.dot(s, fold_ref[...], preferred_element_type=jnp.float32)
        ss_c = jnp.dot(ss, fold_ref[...], preferred_element_type=jnp.float32)
        mean = s_c * inv_m                                # (1, C)
        var = ss_c * inv_m - mean * mean                  # biased variance
        scale = g_ref[...] * jax.lax.rsqrt(var + EPS)     # rsqrt -> EUP
        shift = b_ref[...] - mean * scale
        scale_l = jnp.dot(scale, spread_ref[...],
                          preferred_element_type=jnp.float32)
        shift_l = jnp.dot(shift, spread_ref[...],
                          preferred_element_type=jnp.float32)
        return h * scale_l + shift_l                      # (R, L)

    def prelu(h):
        return jnp.where(h >= 0, h, a * h)

    # ---- conv1 (single bf16 MXU matmul, f32 accumulate) -> bn1 -> prelu ----
    c1 = jnp.dot(lhs1_ref[...], w1_ref[...], preferred_element_type=jnp.float32)
    h1 = prelu(batchnorm(c1, g1_ref, b1_ref))             # (R, L) f32

    # ---- re-pad for conv2: zero only the two border pair-rows ----
    zrow = jnp.zeros((N, 1, L), jnp.float32)
    pbuf[:, 0:1, :] = zrow
    pbuf[:, Tp2 - 1:Tp2, :] = zrow
    pbuf[:, 1:1 + T, :] = h1.reshape(N, T, L)             # full-width interior

    # ---- assemble conv2 lhs: [prev row | pair rows | next row] per pair ----
    up = pbuf[:, 0:T, half:L]          # row 2t-1 (zero at t=0)       (N,T,half)
    mid = pbuf[:, 1:1 + T, :]          # rows 2t, 2t+1                (N,T,L)
    down = pbuf[:, 2:2 + T, 0:half]    # row 2t+2 (zero at t=T-1)     (N,T,half)
    lhs2 = jnp.concatenate([up, mid, down], axis=-1)      # (N, T, 2L)
    lhs2 = lhs2.reshape(R, 2 * L).astype(jnp.bfloat16)    # cast once

    # ---- conv2 -> bn2 -> residual add -> prelu (unmasked 128-lane store) ----
    c2 = jnp.dot(lhs2, w2_ref[...], preferred_element_type=jnp.float32)
    h2 = batchnorm(c2, g2_ref, b2_ref)
    out_ref[...] = prelu(h2 + id_ref[...])


def _pack_conv_weight_pair(w_oihw, W):
    """Pack an OIHW (O, I, 3, 3) conv weight into a (4*W*I, 2*W*O) bf16 banded
    block-Toeplitz matrix for the row-pair formulation.

    rhs[(rp, wp, ci), (r, w, co)] = w[co, ci, rp - r, wp - w + 1]
        if 0 <= rp - r < 3 and 0 <= wp - w + 1 < 3, else 0.
    Both the vertical (row) and horizontal (W) zero padding are folded into
    the band, so activations never carry explicit zero rows/columns along W.
    """
    O, I, KH, KW = w_oihw.shape
    wk = jnp.transpose(w_oihw, (2, 3, 1, 0)).astype(jnp.float32)   # (KH,KW,I,O)
    kh = jnp.arange(4)[:, None] - jnp.arange(2)[None, :]           # (4, 2)
    kw = jnp.arange(W)[:, None] - jnp.arange(W)[None, :] + 1       # (W, W)
    vh = (kh >= 0) & (kh < KH)
    vw = (kw >= 0) & (kw < KW)
    taps = wk[jnp.clip(kh, 0, KH - 1)[:, :, None, None],
              jnp.clip(kw, 0, KW - 1)[None, None, :, :]]           # (4,2,W,W,I,O)
    mask = (vh[:, :, None, None] & vw[None, None, :, :])[..., None, None]
    taps = jnp.where(mask, taps, 0.0)
    # axes (rp, r, wp, w, ci, co) -> (rp, wp, ci, r, w, co)
    big = jnp.transpose(taps, (0, 2, 4, 1, 3, 5)).reshape(4 * W * I, 2 * W * O)
    return big.astype(jnp.bfloat16)


def basic_block(x_nchw, w1_oihw, w2_oihw, g1, b1, g2, b2, a):
    """x_nchw: (N, C, H, W) f32. Conv weights in PyTorch OIHW layout."""
    N, C, H, W = x_nchw.shape
    Cout = w1_oihw.shape[0]
    assert Cout == C, "BasicBlock residual add requires in_channels == out_channels"
    assert H % 2 == 0, "row-pair packing requires even H"
    T = H // 2
    R = N * T
    L = 2 * W * C                         # 128 at the test shape

    # ---- wrapper glue: layout conversion, padding, weight/param packing ----
    x_nhwc = jnp.transpose(x_nchw, (0, 2, 3, 1)).astype(jnp.float32)   # (N,H,W,C)
    ident = x_nhwc.reshape(R, L)                                       # pair-packed

    # conv1 lhs: overlapping 4-row windows of the vertically padded input,
    # one window per output row-pair, bf16 (cast once, halves input DMA).
    xp = jnp.pad(x_nhwc, ((0, 0), (1, 1), (0, 0), (0, 0))).reshape(N, H + 2, W * C)
    win = 2 * jnp.arange(T)[:, None] + jnp.arange(4)[None, :]          # (T, 4)
    lhs1 = xp[:, win, :].reshape(R, 2 * L).astype(jnp.bfloat16)        # (R, 4*W*C)

    w1k = _pack_conv_weight_pair(w1_oihw, W)
    w2k = _pack_conv_weight_pair(w2_oihw, W)

    eye = jnp.eye(C, dtype=jnp.float32)
    fold = jnp.tile(eye, (2 * W, 1))      # (L, C): lane (r,w,c) -> channel c
    spread = fold.T                       # (C, L)

    g1r = g1.reshape(1, C).astype(jnp.float32)
    b1r = b1.reshape(1, C).astype(jnp.float32)
    g2r = g2.reshape(1, C).astype(jnp.float32)
    b2r = b2.reshape(1, C).astype(jnp.float32)
    a_sc = jnp.asarray(a, jnp.float32).reshape(1, 1)

    vmem = pl.BlockSpec(memory_space=pltpu.MemorySpace.VMEM)
    smem = pl.BlockSpec(memory_space=pltpu.MemorySpace.SMEM)

    out_dense = pl.pallas_call(
        basic_block_kernel,
        out_shape=jax.ShapeDtypeStruct((R, L), jnp.float32),
        in_specs=[vmem] * 10 + [smem],
        out_specs=vmem,
        scratch_shapes=[pltpu.VMEM((N, T + 2, L), jnp.float32)],
    )(lhs1, ident, w1k, w2k, fold, spread, g1r, b1r, g2r, b2r, a_sc)

    # pure layout glue back to NCHW
    return jnp.transpose(out_dense.reshape(N, H, W, C), (0, 3, 1, 2))


def basic_block_reference(x_nchw, w1, w2, g1, b1, g2, b2, a):
    """Pure-JAX reference (same training-mode BN semantics, full f32)."""
    def conv(x, w):
        return jax.lax.conv_general_dilated(
            x, w, window_strides=(1, 1), padding=((1, 1), (1, 1)),
            dimension_numbers=('NCHW', 'OIHW', 'NCHW'),
            precision=jax.lax.Precision.HIGHEST)

    def bn(x, g, b):
        mean = x.mean(axis=(0, 2, 3), keepdims=True)
        var = ((x - mean) ** 2).mean(axis=(0, 2, 3), keepdims=True)
        return ((x - mean) * jax.lax.rsqrt(var + EPS)
                * g.reshape(1, -1, 1, 1) + b.reshape(1, -1, 1, 1))

    def prelu(x):
        return jnp.where(x >= 0, x, a * x)

    h = prelu(bn(conv(x_nchw, w1), g1, b1))
    h = bn(conv(h, w2), g2, b2)
    return prelu(h + x_nchw)


if __name__ == "__main__":
    N, C, H, W = 2, 4, 16, 16

    key = jax.random.PRNGKey(0)
    kx, kw1, kw2 = jax.random.split(key, 3)

    x = jax.random.normal(kx, (N, C, H, W), jnp.float32)
    # Deterministic parameter init (shapes from BasicBlock.__init__):
    w1 = 0.1 * jax.random.normal(kw1, (C, C, 3, 3), jnp.float32)  # conv1 weight
    w2 = 0.1 * jax.random.normal(kw2, (C, C, 3, 3), jnp.float32)  # conv2 weight
    g1 = jnp.ones((C,), jnp.float32)   # bn1 gamma
    b1 = jnp.zeros((C,), jnp.float32)  # bn1 beta
    g2 = jnp.ones((C,), jnp.float32)   # bn2 gamma
    b2 = jnp.zeros((C,), jnp.float32)  # bn2 beta
    a = jnp.float32(0.25)              # PReLU weight (single shared parameter)

    out = basic_block(x, w1, w2, g1, b1, g2, b2, a)
    out = jax.block_until_ready(out)

    ref = jax.block_until_ready(basic_block_reference(x, w1, w2, g1, b1, g2, b2, a))
    # Tolerance loosened vs. pure-f32 because conv MXU operands are bf16
    # (f32 accumulation), per the performance guidance.
    np.testing.assert_allclose(np.asarray(out), np.asarray(ref),
                               rtol=1e-2, atol=2e-2)

    print("KERNEL_OK")
</pallas_src>

<mosaic_0001>
module attributes {stable_mosaic.version = 11 : i64} {
  func.func @basic_block_kernel(%arg0: memref<16x256xbf16, #tpu.memory_space<vmem>>, %arg1: memref<16x128xf32, #tpu.memory_space<vmem>>, %arg2: memref<256x128xbf16, #tpu.memory_space<vmem>>, %arg3: memref<256x128xbf16, #tpu.memory_space<vmem>>, %arg4: memref<128x4xf32, #tpu.memory_space<vmem>>, %arg5: memref<4x128xf32, #tpu.memory_space<vmem>>, %arg6: memref<1x4xf32, #tpu.memory_space<vmem>>, %arg7: memref<1x4xf32, #tpu.memory_space<vmem>>, %arg8: memref<1x4xf32, #tpu.memory_space<vmem>>, %arg9: memref<1x4xf32, #tpu.memory_space<vmem>>, %arg10: memref<1x1xf32, #tpu.memory_space<smem>>, %arg11: memref<16x128xf32, #tpu.memory_space<vmem>>, %arg12: memref<2x10x128xf32, #tpu.memory_space<vmem>>) attributes {dimension_semantics = [], scalar_prefetch = 0 : i64, scratch_operands = 1 : i64, tpu.core_type = #tpu.core_type<tc>} {
    %c0 = arith.constant 0 : index
    %c0_0 = arith.constant 0 : index
    %0 = memref.load %arg10[%c0, %c0_0] : memref<1x1xf32, #tpu.memory_space<smem>>
    %c0_1 = arith.constant 0 : index
    %c0_2 = arith.constant 0 : index
    %1 = vector.load %arg0[%c0_1, %c0_2] : memref<16x256xbf16, #tpu.memory_space<vmem>>, vector<16x256xbf16>
    %c0_3 = arith.constant 0 : index
    %c0_4 = arith.constant 0 : index
    %2 = vector.load %arg2[%c0_3, %c0_4] : memref<256x128xbf16, #tpu.memory_space<vmem>>, vector<256x128xbf16>
    %cst = arith.constant dense<0.000000e+00> : vector<16x128xf32>
    %3 = tpu.matmul %1, %2, %cst {dimension_numbers = #tpu.dot_dimension_numbers<[1], [0], [0], [1], [0, 0, 1, 1], [], []>} : vector<16x256xbf16>, vector<256x128xbf16>, vector<16x128xf32> -> vector<16x128xf32>
    %cst_5 = arith.constant dense<0.000000e+00> : vector<128xf32>
    %4 = vector.multi_reduction <add>, %3, %cst_5 [0] : vector<16x128xf32> to vector<128xf32>
    %5 = vector.shape_cast %4 : vector<128xf32> to vector<1x128xf32>
    %6 = arith.mulf %3, %3 : vector<16x128xf32>
    %cst_6 = arith.constant dense<0.000000e+00> : vector<128xf32>
    %7 = vector.multi_reduction <add>, %6, %cst_6 [0] : vector<16x128xf32> to vector<128xf32>
    %8 = vector.shape_cast %7 : vector<128xf32> to vector<1x128xf32>
    %c0_7 = arith.constant 0 : index
    %c0_8 = arith.constant 0 : index
    %9 = vector.load %arg4[%c0_7, %c0_8] : memref<128x4xf32, #tpu.memory_space<vmem>>, vector<128x4xf32>
    %cst_9 = arith.constant dense<0.000000e+00> : vector<1x4xf32>
    %10 = tpu.matmul %5, %9, %cst_9 {dimension_numbers = #tpu.dot_dimension_numbers<[1], [0], [0], [1], [0, 0, 1, 1], [], []>} : vector<1x128xf32>, vector<128x4xf32>, vector<1x4xf32> -> vector<1x4xf32>
    %c0_10 = arith.constant 0 : index
    %c0_11 = arith.constant 0 : index
    %11 = vector.load %arg4[%c0_10, %c0_11] : memref<128x4xf32, #tpu.memory_space<vmem>>, vector<128x4xf32>
    %cst_12 = arith.constant dense<0.000000e+00> : vector<1x4xf32>
    %12 = tpu.matmul %8, %11, %cst_12 {dimension_numbers = #tpu.dot_dimension_numbers<[1], [0], [0], [1], [0, 0, 1, 1], [], []>} : vector<1x128xf32>, vector<128x4xf32>, vector<1x4xf32> -> vector<1x4xf32>
    %cst_13 = arith.constant 0.001953125 : f32
    %13 = vector.broadcast %cst_13 : f32 to vector<1x4xf32>
    %14 = arith.mulf %10, %13 : vector<1x4xf32>
    %cst_14 = arith.constant 0.001953125 : f32
    %15 = vector.broadcast %cst_14 : f32 to vector<1x4xf32>
    %16 = arith.mulf %12, %15 : vector<1x4xf32>
    %17 = arith.mulf %14, %14 : vector<1x4xf32>
    %18 = arith.subf %16, %17 : vector<1x4xf32>
    %c0_15 = arith.constant 0 : index
    %c0_16 = arith.constant 0 : index
    %19 = vector.load %arg6[%c0_15, %c0_16] : memref<1x4xf32, #tpu.memory_space<vmem>>, vector<1x4xf32>
    %cst_17 = arith.constant 9.99999974E-6 : f32
    %20 = vector.broadcast %cst_17 : f32 to vector<1x4xf32>
    %21 = arith.addf %18, %20 : vector<1x4xf32>
    %22 = math.rsqrt %21 : vector<1x4xf32>
    %23 = arith.mulf %19, %22 : vector<1x4xf32>
    %c0_18 = arith.constant 0 : index
    %c0_19 = arith.constant 0 : index
    %24 = vector.load %arg7[%c0_18, %c0_19] : memref<1x4xf32, #tpu.memory_space<vmem>>, vector<1x4xf32>
    %25 = arith.mulf %14, %23 : vector<1x4xf32>
    %26 = arith.subf %24, %25 : vector<1x4xf32>
    %c0_20 = arith.constant 0 : index
    %c0_21 = arith.constant 0 : index
    %27 = vector.load %arg5[%c0_20, %c0_21] : memref<4x128xf32, #tpu.memory_space<vmem>>, vector<4x128xf32>
    %cst_22 = arith.constant dense<0.000000e+00> : vector<1x128xf32>
    %28 = tpu.matmul %23, %27, %cst_22 {dimension_numbers = #tpu.dot_dimension_numbers<[1], [0], [0], [1], [0, 0, 1, 1], [], []>} : vector<1x4xf32>, vector<4x128xf32>, vector<1x128xf32> -> vector<1x128xf32>
    %c0_23 = arith.constant 0 : index
    %c0_24 = arith.constant 0 : index
    %29 = vector.load %arg5[%c0_23, %c0_24] : memref<4x128xf32, #tpu.memory_space<vmem>>, vector<4x128xf32>
    %cst_25 = arith.constant dense<0.000000e+00> : vector<1x128xf32>
    %30 = tpu.matmul %26, %29, %cst_25 {dimension_numbers = #tpu.dot_dimension_numbers<[1], [0], [0], [1], [0, 0, 1, 1], [], []>} : vector<1x4xf32>, vector<4x128xf32>, vector<1x128xf32> -> vector<1x128xf32>
    %31 = vector.broadcast %28 : vector<1x128xf32> to vector<16x128xf32>
    %32 = arith.mulf %3, %31 : vector<16x128xf32>
    %33 = vector.broadcast %30 : vector<1x128xf32> to vector<16x128xf32>
    %34 = arith.addf %32, %33 : vector<16x128xf32>
    %cst_26 = arith.constant 0.000000e+00 : f32
    %35 = vector.broadcast %cst_26 : f32 to vector<16x128xf32>
    %36 = arith.cmpf oge, %34, %35 : vector<16x128xf32>
    %37 = vector.broadcast %0 : f32 to vector<16x128xf32>
    %38 = arith.mulf %37, %34 : vector<16x128xf32>
    %39 = arith.select %36, %34, %38 : vector<16x128xi1>, vector<16x128xf32>
    %cst_27 = arith.constant 0.000000e+00 : f32
    %40 = vector.broadcast %cst_27 : f32 to vector<2x1x128xf32>
    %c0_28 = arith.constant 0 : index
    %c0_29 = arith.constant 0 : index
    %c0_30 = arith.constant 0 : index
    %41 = vector.load %arg12[%c0_28, %c0_29, %c0_30] : memref<2x10x128xf32, #tpu.memory_space<vmem>>, vector<2x1x128xf32>
    tpu.vector_store %arg12[%c0_28, %c0_29, %c0_30], %40 {strides = array<i32>} : memref<2x10x128xf32, #tpu.memory_space<vmem>>, vector<2x1x128xf32>,
    %c0_31 = arith.constant 0 : index
    %c9 = arith.constant 9 : index
    %c0_32 = arith.constant 0 : index
    %42 = vector.load %arg12[%c0_31, %c9, %c0_32] : memref<2x10x128xf32, #tpu.memory_space<vmem>>, vector<2x1x128xf32>
    tpu.vector_store %arg12[%c0_31, %c9, %c0_32], %40 {strides = array<i32>} : memref<2x10x128xf32, #tpu.memory_space<vmem>>, vector<2x1x128xf32>,
    %43 = vector.shape_cast %39 : vector<16x128xf32> to vector<2x8x128xf32>
    %c0_33 = arith.constant 0 : index
    %c1 = arith.constant 1 : index
    %c0_34 = arith.constant 0 : index
    %44 = vector.load %arg12[%c0_33, %c1, %c0_34] : memref<2x10x128xf32, #tpu.memory_space<vmem>>, vector<2x8x128xf32>
    tpu.vector_store %arg12[%c0_33, %c1, %c0_34], %43 {strides = array<i32>} : memref<2x10x128xf32, #tpu.memory_space<vmem>>, vector<2x8x128xf32>,
    %c0_35 = arith.constant 0 : index
    %c0_36 = arith.constant 0 : index
    %c64 = arith.constant 64 : index
    %45 = vector.load %arg12[%c0_35, %c0_36, %c64] : memref<2x10x128xf32, #tpu.memory_space<vmem>>, vector<2x8x64xf32>
    %c0_37 = arith.constant 0 : index
    %c1_38 = arith.constant 1 : index
    %c0_39 = arith.constant 0 : index
    %46 = vector.load %arg12[%c0_37, %c1_38, %c0_39] : memref<2x10x128xf32, #tpu.memory_space<vmem>>, vector<2x8x128xf32>
    %c0_40 = arith.constant 0 : index
    %c2 = arith.constant 2 : index
    %c0_41 = arith.constant 0 : index
    %47 = vector.load %arg12[%c0_40, %c2, %c0_41] : memref<2x10x128xf32, #tpu.memory_space<vmem>>, vector<2x8x64xf32>
    %48 = tpu.concatenate %45, %46, %47 in 2 : vector<2x8x64xf32>, vector<2x8x128xf32>, vector<2x8x64xf32> -> vector<2x8x256xf32>
    %49 = vector.shape_cast %48 : vector<2x8x256xf32> to vector<16x256xf32>
    %50 = arith.truncf %49 : vector<16x256xf32> to vector<16x256xbf16>
    %c0_42 = arith.constant 0 : index
    %c0_43 = arith.constant 0 : index
    %51 = vector.load %arg3[%c0_42, %c0_43] : memref<256x128xbf16, #tpu.memory_space<vmem>>, vector<256x128xbf16>
    %cst_44 = arith.constant dense<0.000000e+00> : vector<16x128xf32>
    %52 = tpu.matmul %50, %51, %cst_44 {dimension_numbers = #tpu.dot_dimension_numbers<[1], [0], [0], [1], [0, 0, 1, 1], [], []>} : vector<16x256xbf16>, vector<256x128xbf16>, vector<16x128xf32> -> vector<16x128xf32>
    %cst_45 = arith.constant dense<0.000000e+00> : vector<128xf32>
    %53 = vector.multi_reduction <add>, %52, %cst_45 [0] : vector<16x128xf32> to vector<128xf32>
    %54 = vector.shape_cast %53 : vector<128xf32> to vector<1x128xf32>
    %55 = arith.mulf %52, %52 : vector<16x128xf32>
    %cst_46 = arith.constant dense<0.000000e+00> : vector<128xf32>
    %56 = vector.multi_reduction <add>, %55, %cst_46 [0] : vector<16x128xf32> to vector<128xf32>
    %57 = vector.shape_cast %56 : vector<128xf32> to vector<1x128xf32>
    %c0_47 = arith.constant 0 : index
    %c0_48 = arith.constant 0 : index
    %58 = vector.load %arg4[%c0_47, %c0_48] : memref<128x4xf32, #tpu.memory_space<vmem>>, vector<128x4xf32>
    %cst_49 = arith.constant dense<0.000000e+00> : vector<1x4xf32>
    %59 = tpu.matmul %54, %58, %cst_49 {dimension_numbers = #tpu.dot_dimension_numbers<[1], [0], [0], [1], [0, 0, 1, 1], [], []>} : vector<1x128xf32>, vector<128x4xf32>, vector<1x4xf32> -> vector<1x4xf32>
    %c0_50 = arith.constant 0 : index
    %c0_51 = arith.constant 0 : index
    %60 = vector.load %arg4[%c0_50, %c0_51] : memref<128x4xf32, #tpu.memory_space<vmem>>, vector<128x4xf32>
    %cst_52 = arith.constant dense<0.000000e+00> : vector<1x4xf32>
    %61 = tpu.matmul %57, %60, %cst_52 {dimension_numbers = #tpu.dot_dimension_numbers<[1], [0], [0], [1], [0, 0, 1, 1], [], []>} : vector<1x128xf32>, vector<128x4xf32>, vector<1x4xf32> -> vector<1x4xf32>
    %cst_53 = arith.constant 0.001953125 : f32
    %62 = vector.broadcast %cst_53 : f32 to vector<1x4xf32>
    %63 = arith.mulf %59, %62 : vector<1x4xf32>
    %cst_54 = arith.constant 0.001953125 : f32
    %64 = vector.broadcast %cst_54 : f32 to vector<1x4xf32>
    %65 = arith.mulf %61, %64 : vector<1x4xf32>
    %66 = arith.mulf %63, %63 : vector<1x4xf32>
    %67 = arith.subf %65, %66 : vector<1x4xf32>
    %c0_55 = arith.constant 0 : index
    %c0_56 = arith.constant 0 : index
    %68 = vector.load %arg8[%c0_55, %c0_56] : memref<1x4xf32, #tpu.memory_space<vmem>>, vector<1x4xf32>
    %cst_57 = arith.constant 9.99999974E-6 : f32
    %69 = vector.broadcast %cst_57 : f32 to vector<1x4xf32>
    %70 = arith.addf %67, %69 : vector<1x4xf32>
    %71 = math.rsqrt %70 : vector<1x4xf32>
    %72 = arith.mulf %68, %71 : vector<1x4xf32>
    %c0_58 = arith.constant 0 : index
    %c0_59 = arith.constant 0 : index
    %73 = vector.load %arg9[%c0_58, %c0_59] : memref<1x4xf32, #tpu.memory_space<vmem>>, vector<1x4xf32>
    %74 = arith.mulf %63, %72 : vector<1x4xf32>
    %75 = arith.subf %73, %74 : vector<1x4xf32>
    %c0_60 = arith.constant 0 : index
    %c0_61 = arith.constant 0 : index
    %76 = vector.load %arg5[%c0_60, %c0_61] : memref<4x128xf32, #tpu.memory_space<vmem>>, vector<4x128xf32>
    %cst_62 = arith.constant dense<0.000000e+00> : vector<1x128xf32>
    %77 = tpu.matmul %72, %76, %cst_62 {dimension_numbers = #tpu.dot_dimension_numbers<[1], [0], [0], [1], [0, 0, 1, 1], [], []>} : vector<1x4xf32>, vector<4x128xf32>, vector<1x128xf32> -> vector<1x128xf32>
    %c0_63 = arith.constant 0 : index
    %c0_64 = arith.constant 0 : index
    %78 = vector.load %arg5[%c0_63, %c0_64] : memref<4x128xf32, #tpu.memory_space<vmem>>, vector<4x128xf32>
    %cst_65 = arith.constant dense<0.000000e+00> : vector<1x128xf32>
    %79 = tpu.matmul %75, %78, %cst_65 {dimension_numbers = #tpu.dot_dimension_numbers<[1], [0], [0], [1], [0, 0, 1, 1], [], []>} : vector<1x4xf32>, vector<4x128xf32>, vector<1x128xf32> -> vector<1x128xf32>
    %80 = vector.broadcast %77 : vector<1x128xf32> to vector<16x128xf32>
    %81 = arith.mulf %52, %80 : vector<16x128xf32>
    %82 = vector.broadcast %79 : vector<1x128xf32> to vector<16x128xf32>
    %83 = arith.addf %81, %82 : vector<16x128xf32>
    %c0_66 = arith.constant 0 : index
    %c0_67 = arith.constant 0 : index
    %84 = vector.load %arg1[%c0_66, %c0_67] : memref<16x128xf32, #tpu.memory_space<vmem>>, vector<16x128xf32>
    %85 = arith.addf %83, %84 : vector<16x128xf32>
    %cst_68 = arith.constant 0.000000e+00 : f32
    %86 = vector.broadcast %cst_68 : f32 to vector<16x128xf32>
    %87 = arith.cmpf oge, %85, %86 : vector<16x128xf32>
    %88 = vector.broadcast %0 : f32 to vector<16x128xf32>
    %89 = arith.mulf %88, %85 : vector<16x128xf32>
    %90 = arith.select %87, %85, %89 : vector<16x128xi1>, vector<16x128xf32>
    %c0_69 = arith.constant 0 : index
    %c0_70 = arith.constant 0 : index
    %91 = vector.load %arg11[%c0_69, %c0_70] : memref<16x128xf32, #tpu.memory_space<vmem>>, vector<16x128xf32>
    tpu.vector_store %arg11[%c0_69, %c0_70], %90 {strides = array<i32>} : memref<16x128xf32, #tpu.memory_space<vmem>>, vector<16x128xf32>,
    return
  }
}

</mosaic_0001>

<llo_original>
// kernel: tpu_custom_call.1
$region0: #{tpu_custom_call.1}
  #allocation0 [shape = 'u32[]', space=smem, size = 0x4, offset = 0x4, fixed_abs, tag = 'smem constant byte address 0x4 - core index']
  #allocation1 [shape = 'u32[144,128]{1,0:T(1,128)}', space=vmem, size = 0x12000, scoped, tag = 'internal scratch']
  #allocation2 [shape = 'f32[2,10,128]{2,1,0:T(8,128)}', space=vmem, size = 0x4000, scoped, tag = 'scratch operand']
  #allocation3 [shape = 'f32[1,1]{1,0:T(1,128)S(6)}', space=smem, size = 0x200, scoped, tag = 'scoped memory for tpu_custom_call.1']
  %s0 = inlined_call_operand.hbm [shape: bf16[16,256], index: 0, kind: input, shape index: {}]
  %s1 = inlined_call_operand.hbm [shape: f32[16,128], index: 1, kind: input, shape index: {}]
  %s2 = inlined_call_operand.vmem [shape: bf16[256,128], index: 2, kind: input, shape index: {}]
  %s3 = inlined_call_operand.hbm [shape: bf16[256,128], index: 3, kind: input, shape index: {}]
  %s4 = inlined_call_operand.vmem [shape: f32[128,4], index: 4, kind: input, shape index: {}]
  %s5 = inlined_call_operand.vmem [shape: f32[4,128], index: 5, kind: input, shape index: {}]
  %s6 = inlined_call_operand.vmem [shape: f32[1,4], index: 6, kind: input, shape index: {}]
  %s7 = inlined_call_operand.vmem [shape: f32[1,4], index: 7, kind: input, shape index: {}]
  %s8 = inlined_call_operand.vmem [shape: f32[1,4], index: 8, kind: input, shape index: {}]
  %s9 = inlined_call_operand.vmem [shape: f32[1,4], index: 9, kind: input, shape index: {}]
  %s10 = inlined_call_operand.<no memory space> [shape: f32[1,1], index: 10, kind: input, shape index: {}]
  %s11 = inlined_call_operand.hbm [shape: f32[16,128], index: 11, kind: output, shape index: {}]
  %s12 = sld [smem:[#allocation0]]
  $region66: #{tpu_custom_call.1} parent=0
    _
  %s14 = ssub.s32 1, %s12
  %s15 = scalar_select 0, %s14, %s12
  %16 = sst [smem:[#allocation3]] %s10
  $region1: #{tpu_custom_call.1} parent=0
    #allocation4 [shape = 'u8[8192]{0}', space=vmem, size = 0x2000, scoped, tag = 'input window, operand 0, single buffered']
    #allocation5 [shape = 's32[1]{0}', space=sflag, size = 0x4, scoped, tag = 'scoped memory for tpu_custom_call.1']
    #allocation6 [shape = 's32[1]{0}', space=sflag, size = 0x4, scoped, tag = 'scoped memory for tpu_custom_call.1']
    #allocation7 [shape = 'u8[8192]{0}', space=vmem, size = 0x2000, scoped, tag = 'input window, operand 1, single buffered']
    #allocation8 [shape = 's32[1]{0}', space=sflag, size = 0x4, scoped, tag = 'scoped memory for tpu_custom_call.1']
    #allocation9 [shape = 'u8[65536]{0}', space=vmem, size = 0x10000, scoped, tag = 'input window, operand 3, single buffered']
    #allocation10 [shape = 'u8[8192]{0}', space=vmem, size = 0x2000, scoped, tag = 'output window, operand 0, single buffered']
    %17 = vsyncpa [#allocation5], 0
    %18 = vsyncpa [#allocation8], 0
    %19 = vsyncpa [#allocation6], 0
    // Predicated region
    $region2: #{tpu_custom_call.1} parent=1 // pred_check
      _
    $region3: #{tpu_custom_call.1} parent=1 // pred_check_branch
      %21 = sbr.rel (0) target = $region5
    $region4: #{tpu_custom_call.1} parent=1 // pred_region
      %s23 = ssub.s32 256, 256
      %24 = vsyncadd [#allocation5], %s23
      %s25 = sshll.u32 [#allocation4], 4
      %s26 = int_to_ptr.vmem [resolvable:$true] %s25
      %31 = dma.hbm_to_vmem [thread:$0]  %s0, 256, %s26, [#allocation5], 128, 128, 8
    $region5: #{tpu_custom_call.1} parent=1 // pred_fallthru
      _
    // Predicated region
    $region6: #{tpu_custom_call.1} parent=1 // pred_check
      _
    $region7: #{tpu_custom_call.1} parent=1 // pred_check_branch
      %33 = sbr.rel (0) target = $region9
    $region8: #{tpu_custom_call.1} parent=1 // pred_region
      %s35 = ssub.s32 256, 256
      %36 = vsyncadd [#allocation8], %s35
      %s37 = sshll.u32 [#allocation7], 4
      %s38 = int_to_ptr.vmem [resolvable:$true] %s37
      %43 = dma.hbm_to_vmem [thread:$0]  %s1, 256, %s38, [#allocation8], 128, 128, 8
    $region9: #{tpu_custom_call.1} parent=1 // pred_fallthru
      _
    // Predicated region
    $region10: #{tpu_custom_call.1} parent=1 // pred_check
      _
    $region11: #{tpu_custom_call.1} parent=1 // pred_check_branch
      %45 = sbr.rel (0) target = $region13
    $region12: #{tpu_custom_call.1} parent=1 // pred_region
      _
    $region13: #{tpu_custom_call.1} parent=1 // pred_fallthru
      _
    // Predicated region
    $region14: #{tpu_custom_call.1} parent=1 // pred_check
      _
    $region15: #{tpu_custom_call.1} parent=1 // pred_check_branch
      %47 = sbr.rel (0) target = $region17
    $region16: #{tpu_custom_call.1} parent=1 // pred_region
      %s49 = ssub.s32 2048, 2048
      %50 = vsyncadd [#allocation8], %s49
      %s51 = sshll.u32 [#allocation9], 4
      %s52 = int_to_ptr.vmem [resolvable:$true] %s51
      %57 = dma.hbm_to_vmem [thread:$0]  %s3, 2048, %s52, [#allocation8], 64, 64, 4
    $region17: #{tpu_custom_call.1} parent=1 // pred_fallthru
      _
    // Predicated region
    $region18: #{tpu_custom_call.1} parent=1 // pred_check
      _
    $region19: #{tpu_custom_call.1} parent=1 // pred_check_branch
      %59 = sbr.rel (0) target = $region21
    $region20: #{tpu_custom_call.1} parent=1 // pred_region
      _
    $region21: #{tpu_custom_call.1} parent=1 // pred_fallthru
      _
    // Predicated region
    $region22: #{tpu_custom_call.1} parent=1 // pred_check
      _
    $region23: #{tpu_custom_call.1} parent=1 // pred_check_branch
      %61 = sbr.rel (0) target = $region25
    $region24: #{tpu_custom_call.1} parent=1 // pred_region
      _
    $region25: #{tpu_custom_call.1} parent=1 // pred_fallthru
      _
    // Predicated region
    $region26: #{tpu_custom_call.1} parent=1 // pred_check
      _
    $region27: #{tpu_custom_call.1} parent=1 // pred_check_branch
      %63 = sbr.rel (0) target = $region29
    $region28: #{tpu_custom_call.1} parent=1 // pred_region
      _
    $region29: #{tpu_custom_call.1} parent=1 // pred_fallthru
      _
    // Predicated region
    $region30: #{tpu_custom_call.1} parent=1 // pred_check
      _
    $region31: #{tpu_custom_call.1} parent=1 // pred_check_branch
      %65 = sbr.rel (0) target = $region33
    $region32: #{tpu_custom_call.1} parent=1 // pred_region
      _
    $region33: #{tpu_custom_call.1} parent=1 // pred_fallthru
      _
    // Predicated region
    $region34: #{tpu_custom_call.1} parent=1 // pred_check
      _
    $region35: #{tpu_custom_call.1} parent=1 // pred_check_branch
      %67 = sbr.rel (0) target = $region37
    $region36: #{tpu_custom_call.1} parent=1 // pred_region
      _
    $region37: #{tpu_custom_call.1} parent=1 // pred_fallthru
      _
    // Predicated region
    $region38: #{tpu_custom_call.1} parent=1 // pred_check
      _
    $region39: #{tpu_custom_call.1} parent=1 // pred_check_branch
      %69 = sbr.rel (0) target = $region41
    $region40: #{tpu_custom_call.1} parent=1 // pred_region
      _
    $region41: #{tpu_custom_call.1} parent=1 // pred_fallthru
      _
    // Predicated region
    $region42: #{tpu_custom_call.1} parent=1 // pred_check
      _
    $region43: #{tpu_custom_call.1} parent=1 // pred_check_branch
      %71 = sbr.rel (0) target = $region45
    $region44: #{tpu_custom_call.1} parent=1 // pred_region
      _
    $region45: #{tpu_custom_call.1} parent=1 // pred_fallthru
      _
    // Predicated region
    $region46: #{tpu_custom_call.1} parent=1 // pred_check
      _
    $region47: #{tpu_custom_call.1} parent=1 // pred_check_branch
      %73 = sbr.rel (0) target = $region49
    $region48: #{tpu_custom_call.1} parent=1 // pred_region
      %74 = dma.done [#allocation5], 256
    $region49: #{tpu_custom_call.1} parent=1 // pred_fallthru
      _
    // Predicated region
    $region50: #{tpu_custom_call.1} parent=1 // pred_check
      _
    $region51: #{tpu_custom_call.1} parent=1 // pred_check_branch
      %76 = sbr.rel (0) target = $region53
    $region52: #{tpu_custom_call.1} parent=1 // pred_region
      %77 = dma.done [#allocation8], 256
    $region53: #{tpu_custom_call.1} parent=1 // pred_fallthru
      _
    // Predicated region
    $region54: #{tpu_custom_call.1} parent=1 // pred_check
      _
    $region55: #{tpu_custom_call.1} parent=1 // pred_check_branch
      %79 = sbr.rel (0) target = $region57
    $region56: #{tpu_custom_call.1} parent=1 // pred_region
      %80 = dma.done [#allocation8], 2048
    $region57: #{tpu_custom_call.1} parent=1 // pred_fallthru
      _
    %s82 = sld [smem:[#allocation3]]
    %v83 = vld [vmem:[#allocation4] sm:$0xff]
    %v84 = vld [vmem:[#allocation4 + $0x8] sm:$0xff]
    %v85 = vld [vmem:[%s2] sm:$0xf]
    %v86 = vld [vmem:[%s2 + $0x4] sm:$0xf]
    %v87 = vld [vmem:[%s2 + $0x8] sm:$0xf]
    %v88 = vld [vmem:[%s2 + $0xc] sm:$0xf]
    %v89 = vld [vmem:[%s2 + $0x10] sm:$0xf]
    %v90 = vld [vmem:[%s2 + $0x14] sm:$0xf]
    %v91 = vld [vmem:[%s2 + $0x18] sm:$0xf]
    %v92 = vld [vmem:[%s2 + $0x1c] sm:$0xf]
    %v93 = vld [vmem:[%s2 + $0x20] sm:$0xf]
    %v94 = vld [vmem:[%s2 + $0x24] sm:$0xf]
    %v95 = vld [vmem:[%s2 + $0x28] sm:$0xf]
    %v96 = vld [vmem:[%s2 + $0x2c] sm:$0xf]
    %v97 = vld [vmem:[%s2 + $0x30] sm:$0xf]
    %v98 = vld [vmem:[%s2 + $0x34] sm:$0xf]
    %v99 = vld [vmem:[%s2 + $0x38] sm:$0xf]
    %v100 = vld [vmem:[%s2 + $0x3c] sm:$0xf]
    %v101 = vld [vmem:[%s2 + $0x40] sm:$0xf]
    %v102 = vld [vmem:[%s2 + $0x44] sm:$0xf]
    %v103 = vld [vmem:[%s2 + $0x48] sm:$0xf]
    %v104 = vld [vmem:[%s2 + $0x4c] sm:$0xf]
    %v105 = vld [vmem:[%s2 + $0x50] sm:$0xf]
    %v106 = vld [vmem:[%s2 + $0x54] sm:$0xf]
    %v107 = vld [vmem:[%s2 + $0x58] sm:$0xf]
    %v108 = vld [vmem:[%s2 + $0x5c] sm:$0xf]
    %v109 = vld [vmem:[%s2 + $0x60] sm:$0xf]
    %v110 = vld [vmem:[%s2 + $0x64] sm:$0xf]
    %v111 = vld [vmem:[%s2 + $0x68] sm:$0xf]
    %v112 = vld [vmem:[%s2 + $0x6c] sm:$0xf]
    %v113 = vld [vmem:[%s2 + $0x70] sm:$0xf]
    %v114 = vld [vmem:[%s2 + $0x74] sm:$0xf]
    %v115 = vld [vmem:[%s2 + $0x78] sm:$0xf]
    %v116 = vld [vmem:[%s2 + $0x7c] sm:$0xf]
    %v119 = vunpack.c.l.b16 %v83
    %v120 = vunpack.c.h.b16 %v83
    %v121 = vunpack.c.l.b16 %v84
    %v122 = vunpack.c.h.b16 %v84
    %v123 = vpack.c.b16 %v121, %v119
    %v124 = vpack.c.b16 %v122, %v120
    %v159 = vunpack.c.l.b16 %v85
    %v160 = vunpack.c.l.b16 %v86
    %v161 = vunpack.c.l.b16 %v87
    %v162 = vunpack.c.l.b16 %v88
    %v163 = vunpack.c.l.b16 %v89
    %v164 = vunpack.c.l.b16 %v90
    %v165 = vunpack.c.l.b16 %v91
    %v166 = vunpack.c.l.b16 %v92
    %v167 = vunpack.c.l.b16 %v93
    %v168 = vunpack.c.l.b16 %v94
    %v169 = vunpack.c.l.b16 %v95
    %v170 = vunpack.c.l.b16 %v96
    %v171 = vunpack.c.l.b16 %v97
    %v172 = vunpack.c.l.b16 %v98
    %v173 = vunpack.c.l.b16 %v99
    %v174 = vunpack.c.l.b16 %v100
    %v175 = vunpack.c.l.b16 %v101
    %v176 = vunpack.c.l.b16 %v102
    %v177 = vunpack.c.l.b16 %v103
    %v178 = vunpack.c.l.b16 %v104
    %v179 = vunpack.c.l.b16 %v105
    %v180 = vunpack.c.l.b16 %v106
    %v181 = vunpack.c.l.b16 %v107
    %v182 = vunpack.c.l.b16 %v108
    %v183 = vunpack.c.l.b16 %v109
    %v184 = vunpack.c.l.b16 %v110
    %v185 = vunpack.c.l.b16 %v111
    %v186 = vunpack.c.l.b16 %v112
    %v187 = vunpack.c.l.b16 %v113
    %v188 = vunpack.c.l.b16 %v114
    %v189 = vunpack.c.l.b16 %v115
    %v190 = vunpack.c.l.b16 %v116
    %v191 = vpack.c.b16 %v160, %v159
    %v192 = vpack.c.b16 %v162, %v161
    %v193 = vpack.c.b16 %v164, %v163
    %v194 = vpack.c.b16 %v166, %v165
    %v195 = vpack.c.b16 %v168, %v167
    %v196 = vpack.c.b16 %v170, %v169
    %v197 = vpack.c.b16 %v172, %v171
    %v198 = vpack.c.b16 %v174, %v173
    %v199 = vpack.c.b16 %v176, %v175
    %v200 = vpack.c.b16 %v178, %v177
    %v201 = vpack.c.b16 %v180, %v179
    %v202 = vpack.c.b16 %v182, %v181
    %v203 = vpack.c.b16 %v184, %v183
    %v204 = vpack.c.b16 %v186, %v185
    %v205 = vpack.c.b16 %v188, %v187
    %v206 = vpack.c.b16 %v190, %v189
    %223 = vmatprep.subr.bf16.mxu0 0
    %224 = vmatpush1.bf16.msra.mxu0 %v191
    %225 = vmatprep.subr.bf16.mxu0 0
    %226 = vmatpush1.bf16.msra.mxu0 %v192
    %227 = vmatprep.subr.bf16.mxu0 0
    %228 = vmatpush1.bf16.msra.mxu0 %v193
    %229 = vmatprep.subr.bf16.mxu0 0
    %230 = vmatpush1.bf16.msra.mxu0 %v194
    %231 = vmatprep.subr.bf16.mxu0 0
    %232 = vmatpush1.bf16.msra.mxu0 %v195
    %233 = vmatprep.subr.bf16.mxu0 0
    %234 = vmatpush1.bf16.msra.mxu0 %v196
    %235 = vmatprep.subr.bf16.mxu0 0
    %236 = vmatpush1.bf16.msra.mxu0 %v197
    %237 = vmatprep.subr.bf16.mxu0 0
    %238 = vmatpush1.bf16.msra.mxu0 %v198
    %239 = vmatprep.subr.bf16.mxu0 0
    %240 = vmatpush1.bf16.msra.mxu0 %v199
    %241 = vmatprep.subr.bf16.mxu0 0
    %242 = vmatpush1.bf16.msra.mxu0 %v200
    %243 = vmatprep.subr.bf16.mxu0 0
    %244 = vmatpush1.bf16.msra.mxu0 %v201
    %245 = vmatprep.subr.bf16.mxu0 0
    %246 = vmatpush1.bf16.msra.mxu0 %v202
    %247 = vmatprep.subr.bf16.mxu0 0
    %248 = vmatpush1.bf16.msra.mxu0 %v203
    %249 = vmatprep.subr.bf16.mxu0 0
    %250 = vmatpush1.bf16.msra.mxu0 %v204
    %251 = vmatprep.subr.bf16.mxu0 0
    %252 = vmatpush1.bf16.msra.mxu0 %v205
    %253 = vmatprep.subr.bf16.mxu0 0
    %254 = vmatpush1.bf16.msra.mxu0 %v206
    %255 = vmatprep.mubr.bf16.mxu0 %v124
    %256 = vmatmul.mubr.bf16.gmra.mrb[0].mxu0 %v123
    %v257 = vpop.f32.mrb[0].mxu0
    %v258 = vadd.f32 0.0, %v257
    %v259 = vpop.f32.mrb[0].mxu0
    %v260 = vpop.f32.mrb[0].mxu0
    %v261 = vadd.f32 0.0, %v260
    %v262 = vpop.f32.mrb[0].mxu0
    %263 = vdwg.mxu0
    %v264 = vadd.f32 %v258, %v261
    %v265 = vrot.slane %v264, 4
    %v266 = vadd.f32 %v264, %v265
    %v267 = vrot.slane %v266, 2
    %v268 = vadd.f32 %v266, %v267
    %v269 = vrot.slane %v268, 1
    %v270 = vadd.f32 %v268, %v269
    %v271 = vmul.f32 %v258, %v258
    %v272 = vmul.f32 %v261, %v261
    %v273 = vadd.f32 %v271, %v272
    %v274 = vrot.slane %v273, 4
    %v275 = vadd.f32 %v273, %v274
    %v276 = vrot.slane %v275, 2
    %v277 = vadd.f32 %v275, %v276
    %v278 = vrot.slane %v277, 1
    %v279 = vadd.f32 %v277, %v278
    %v280 = vld [vmem:[%s4] sm:$0xff]
    %v281 = vld [vmem:[%s4 + $0x8] sm:$0xff]
    %v282 = vld [vmem:[%s4 + $0x10] sm:$0xff]
    %v283 = vld [vmem:[%s4 + $0x18] sm:$0xff]
    %v284 = vld [vmem:[%s4 + $0x20] sm:$0xff]
    %v285 = vld [vmem:[%s4 + $0x28] sm:$0xff]
    %v286 = vld [vmem:[%s4 + $0x30] sm:$0xff]
    %v287 = vld [vmem:[%s4 + $0x38] sm:$0xff]
    %v288 = vld [vmem:[%s4 + $0x40] sm:$0xff]
    %v289 = vld [vmem:[%s4 + $0x48] sm:$0xff]
    %v290 = vld [vmem:[%s4 + $0x50] sm:$0xff]
    %v291 = vld [vmem:[%s4 + $0x58] sm:$0xff]
    %v292 = vld [vmem:[%s4 + $0x60] sm:$0xff]
    %v293 = vld [vmem:[%s4 + $0x68] sm:$0xff]
    %v294 = vld [vmem:[%s4 + $0x70] sm:$0xff]
    %v295 = vld [vmem:[%s4 + $0x78] sm:$0xff]
    %296 = vmatprep.subr.mxu0 0.0
    %297 = vmatpush1.msra.mxu0 %v280
    %298 = vmatprep.subr.mxu0 0.0
    %299 = vmatpush1.msra.mxu0 %v281
    %300 = vmatprep.subr.mxu0 0.0
    %301 = vmatpush1.msra.mxu0 %v282
    %302 = vmatprep.subr.mxu0 0.0
    %303 = vmatpush1.msra.mxu0 %v283
    %304 = vmatprep.subr.mxu0 0.0
    %305 = vmatpush1.msra.mxu0 %v284
    %306 = vmatprep.subr.mxu0 0.0
    %307 = vmatpush1.msra.mxu0 %v285
    %308 = vmatprep.subr.mxu0 0.0
    %309 = vmatpush1.msra.mxu0 %v286
    %310 = vmatprep.subr.mxu0 0.0
    %311 = vmatpush1.msra.mxu0 %v287
    %312 = vmatprep.subr.mxu0 0.0
    %313 = vmatpush1.msra.mxu0 %v288
    %314 = vmatprep.subr.mxu0 0.0
    %315 = vmatpush1.msra.mxu0 %v289
    %316 = vmatprep.subr.mxu0 0.0
    %317 = vmatpush1.msra.mxu0 %v290
    %318 = vmatprep.subr.mxu0 0.0
    %319 = vmatpush1.msra.mxu0 %v291
    %320 = vmatprep.subr.mxu0 0.0
    %321 = vmatpush1.msra.mxu0 %v292
    %322 = vmatprep.subr.mxu0 0.0
    %323 = vmatpush1.msra.mxu0 %v293
    %324 = vmatprep.subr.mxu0 0.0
    %325 = vmatpush1.msra.mxu0 %v294
    %326 = vmatprep.subr.mxu0 0.0
    %327 = vmatpush1.msra.mxu0 %v295
    %328 = vmatprep.subr.mxu0 0.0
    %329 = vmatpush1.msra.mxu0 0.0
    %330 = vmatprep.subr.mxu0 0.0
    %331 = vmatpush1.msra.mxu0 0.0
    %332 = vmatprep.subr.mxu0 0.0
    %333 = vmatpush1.msra.mxu0 0.0
    %334 = vmatprep.subr.mxu0 0.0
    %335 = vmatpush1.msra.mxu0 0.0
    %336 = vmatprep.subr.mxu0 0.0
    %337 = vmatpush1.msra.mxu0 0.0
    %338 = vmatprep.subr.mxu0 0.0
    %339 = vmatpush1.msra.mxu0 0.0
    %340 = vmatprep.subr.mxu0 0.0
    %341 = vmatpush1.msra.mxu0 0.0
    %342 = vmatprep.subr.mxu0 0.0
    %343 = vmatpush1.msra.mxu0 0.0
    %344 = vmatprep.subr.mxu0 0.0
    %345 = vmatpush1.msra.mxu0 0.0
    %346 = vmatprep.subr.mxu0 0.0
    %347 = vmatpush1.msra.mxu0 0.0
    %348 = vmatprep.subr.mxu0 0.0
    %349 = vmatpush1.msra.mxu0 0.0
    %350 = vmatprep.subr.mxu0 0.0
    %351 = vmatpush1.msra.mxu0 0.0
    %352 = vmatprep.subr.mxu0 0.0
    %353 = vmatpush1.msra.mxu0 0.0
    %354 = vmatprep.subr.mxu0 0.0
    %355 = vmatpush1.msra.mxu0 0.0
    %356 = vmatprep.subr.mxu0 0.0
    %357 = vmatpush1.msra.mxu0 0.0
    %358 = vmatprep.subr.mxu0 0.0
    %359 = vmatpush1.msra.mxu0 0.0
    %360 = vmatprep.mubr.f32.mxu0 0.0
    %361 = vmatmul.mubr.f32.gmra.mrb[0].mxu0 %v270
    %v362 = vpop.f32.mrb[0].mxu0
    %v363 = vadd.f32 0.0, %v362
    %v364 = vpop.f32.mrb[0].mxu0
    %365 = vdwg.mxu0
    %366 = vmatprep.subr.mxu0 0.0
    %367 = vmatpush1.msra.mxu0 %v280
    %368 = vmatprep.subr.mxu0 0.0
    %369 = vmatpush1.msra.mxu0 %v281
    %370 = vmatprep.subr.mxu0 0.0
    %371 = vmatpush1.msra.mxu0 %v282
    %372 = vmatprep.subr.mxu0 0.0
    %373 = vmatpush1.msra.mxu0 %v283
    %374 = vmatprep.subr.mxu0 0.0
    %375 = vmatpush1.msra.mxu0 %v284
    %376 = vmatprep.subr.mxu0 0.0
    %377 = vmatpush1.msra.mxu0 %v285
    %378 = vmatprep.subr.mxu0 0.0
    %379 = vmatpush1.msra.mxu0 %v286
    %380 = vmatprep.subr.mxu0 0.0
    %381 = vmatpush1.msra.mxu0 %v287
    %382 = vmatprep.subr.mxu0 0.0
    %383 = vmatpush1.msra.mxu0 %v288
    %384 = vmatprep.subr.mxu0 0.0
    %385 = vmatpush1.msra.mxu0 %v289
    %386 = vmatprep.subr.mxu0 0.0
    %387 = vmatpush1.msra.mxu0 %v290
    %388 = vmatprep.subr.mxu0 0.0
    %389 = vmatpush1.msra.mxu0 %v291
    %390 = vmatprep.subr.mxu0 0.0
    %391 = vmatpush1.msra.mxu0 %v292
    %392 = vmatprep.subr.mxu0 0.0
    %393 = vmatpush1.msra.mxu0 %v293
    %394 = vmatprep.subr.mxu0 0.0
    %395 = vmatpush1.msra.mxu0 %v294
    %396 = vmatprep.subr.mxu0 0.0
    %397 = vmatpush1.msra.mxu0 %v295
    %398 = vmatprep.subr.mxu0 0.0
    %399 = vmatpush1.msra.mxu0 0.0
    %400 = vmatprep.subr.mxu0 0.0
    %401 = vmatpush1.msra.mxu0 0.0
    %402 = vmatprep.subr.mxu0 0.0
    %403 = vmatpush1.msra.mxu0 0.0
    %404 = vmatprep.subr.mxu0 0.0
    %405 = vmatpush1.msra.mxu0 0.0
    %406 = vmatprep.subr.mxu0 0.0
    %407 = vmatpush1.msra.mxu0 0.0
    %408 = vmatprep.subr.mxu0 0.0
    %409 = vmatpush1.msra.mxu0 0.0
    %410 = vmatprep.subr.mxu0 0.0
    %411 = vmatpush1.msra.mxu0 0.0
    %412 = vmatprep.subr.mxu0 0.0
    %413 = vmatpush1.msra.mxu0 0.0
    %414 = vmatprep.subr.mxu0 0.0
    %415 = vmatpush1.msra.mxu0 0.0
    %416 = vmatprep.subr.mxu0 0.0
    %417 = vmatpush1.msra.mxu0 0.0
    %418 = vmatprep.subr.mxu0 0.0
    %419 = vmatpush1.msra.mxu0 0.0
    %420 = vmatprep.subr.mxu0 0.0
    %421 = vmatpush1.msra.mxu0 0.0
    %422 = vmatprep.subr.mxu0 0.0
    %423 = vmatpush1.msra.mxu0 0.0
    %424 = vmatprep.subr.mxu0 0.0
    %425 = vmatpush1.msra.mxu0 0.0
    %426 = vmatprep.subr.mxu0 0.0
    %427 = vmatpush1.msra.mxu0 0.0
    %428 = vmatprep.subr.mxu0 0.0
    %429 = vmatpush1.msra.mxu0 0.0
    %430 = vmatprep.mubr.f32.mxu0 0.0
    %431 = vmatmul.mubr.f32.gmra.mrb[0].mxu0 %v279
    %v432 = vpop.f32.mrb[0].mxu0
    %v433 = vadd.f32 0.0, %v432
    %v434 = vpop.f32.mrb[0].mxu0
    %435 = vdwg.mxu0
    %v436 = vmul.f32 %v363, 0.001953125
    %v437 = vmul.f32 %v433, 0.001953125
    %v438 = vmul.f32 %v436, %v436
    %v439 = vsub.f32 %v437, %v438
    %v440 = vld [vmem:[%s6] sm:$0x1]
    %v441 = vadd.f32 %v439, 1e-05
    %v442 = vrsqrt.pop %v441
    %v443 = vmul.f32 %v440, %v442
    %v444 = vld [vmem:[%s7] sm:$0x1]
    %v445 = vmul.f32 %v436, %v443
    %v446 = vsub.f32 %v444, %v445
    %v447 = vld [vmem:[%s5] sm:$0xf]
    %vm448 = vcmask 31744
    %v450 = vsel %vm448, %v443, 0
    %vm452 = vcmask 1043456
    %v454 = vsel %vm452, %v447, 0
    %456 = vmatprep.subr.mxu0 0.0
    %457 = vmatpush1.msra.mxu0 %v454
    %458 = vmatprep.subr.mxu0 0.0
    %459 = vmatpush1.msra.mxu0 0.0
    %460 = vmatprep.subr.mxu0 0.0
    %461 = vmatpush1.msra.mxu0 0.0
    %462 = vmatprep.subr.mxu0 0.0
    %463 = vmatpush1.msra.mxu0 0.0
    %464 = vmatprep.subr.mxu0 0.0
    %465 = vmatpush1.msra.mxu0 0.0
    %466 = vmatprep.subr.mxu0 0.0
    %467 = vmatpush1.msra.mxu0 0.0
    %468 = vmatprep.subr.mxu0 0.0
    %469 = vmatpush1.msra.mxu0 0.0
    %470 = vmatprep.subr.mxu0 0.0
    %471 = vmatpush1.msra.mxu0 0.0
    %472 = vmatprep.subr.mxu0 0.0
    %473 = vmatpush1.msra.mxu0 0.0
    %474 = vmatprep.subr.mxu0 0.0
    %475 = vmatpush1.msra.mxu0 0.0
    %476 = vmatprep.subr.mxu0 0.0
    %477 = vmatpush1.msra.mxu0 0.0
    %478 = vmatprep.subr.mxu0 0.0
    %479 = vmatpush1.msra.mxu0 0.0
    %480 = vmatprep.subr.mxu0 0.0
    %481 = vmatpush1.msra.mxu0 0.0
    %482 = vmatprep.subr.mxu0 0.0
    %483 = vmatpush1.msra.mxu0 0.0
    %484 = vmatprep.subr.mxu0 0.0
    %485 = vmatpush1.msra.mxu0 0.0
    %486 = vmatprep.subr.mxu0 0.0
    %487 = vmatpush1.msra.mxu0 0.0
    %488 = vmatprep.subr.mxu0 0.0
    %489 = vmatpush1.msra.mxu0 0.0
    %490 = vmatprep.subr.mxu0 0.0
    %491 = vmatpush1.msra.mxu0 0.0
    %492 = vmatprep.subr.mxu0 0.0
    %493 = vmatpush1.msra.mxu0 0.0
    %494 = vmatprep.subr.mxu0 0.0
    %495 = vmatpush1.msra.mxu0 0.0
    %496 = vmatprep.subr.mxu0 0.0
    %497 = vmatpush1.msra.mxu0 0.0
    %498 = vmatprep.subr.mxu0 0.0
    %499 = vmatpush1.msra.mxu0 0.0
    %500 = vmatprep.subr.mxu0 0.0
    %501 = vmatpush1.msra.mxu0 0.0
    %502 = vmatprep.subr.mxu0 0.0
    %503 = vmatpush1.msra.mxu0 0.0
    %504 = vmatprep.subr.mxu0 0.0
    %505 = vmatpush1.msra.mxu0 0.0
    %506 = vmatprep.subr.mxu0 0.0
    %507 = vmatpush1.msra.mxu0 0.0
    %508 = vmatprep.subr.mxu0 0.0
    %509 = vmatpush1.msra.mxu0 0.0
    %510 = vmatprep.subr.mxu0 0.0
    %511 = vmatpush1.msra.mxu0 0.0
    %512 = vmatprep.subr.mxu0 0.0
    %513 = vmatpush1.msra.mxu0 0.0
    %514 = vmatprep.subr.mxu0 0.0
    %515 = vmatpush1.msra.mxu0 0.0
    %516 = vmatprep.subr.mxu0 0.0
    %517 = vmatpush1.msra.mxu0 0.0
    %518 = vmatprep.subr.mxu0 0.0
    %519 = vmatpush1.msra.mxu0 0.0
    %520 = vmatprep.mubr.f32.mxu0 0.0
    %521 = vmatmul.mubr.f32.gmra.mrb[0].mxu0 %v450
    %v522 = vpop.f32.mrb[0].mxu0
    %v523 = vadd.f32 0.0, %v522
    %v524 = vpop.f32.mrb[0].mxu0
    %525 = vdwg.mxu0
    %v527 = vsel %vm448, %v446, 0
    %529 = vmatprep.subr.mxu0 0.0
    %530 = vmatpush1.msra.mxu0 %v454
    %531 = vmatprep.subr.mxu0 0.0
    %532 = vmatpush1.msra.mxu0 0.0
    %533 = vmatprep.subr.mxu0 0.0
    %534 = vmatpush1.msra.mxu0 0.0
    %535 = vmatprep.subr.mxu0 0.0
    %536 = vmatpush1.msra.mxu0 0.0
    %537 = vmatprep.subr.mxu0 0.0
    %538 = vmatpush1.msra.mxu0 0.0
    %539 = vmatprep.subr.mxu0 0.0
    %540 = vmatpush1.msra.mxu0 0.0
    %541 = vmatprep.subr.mxu0 0.0
    %542 = vmatpush1.msra.mxu0 0.0
    %543 = vmatprep.subr.mxu0 0.0
    %544 = vmatpush1.msra.mxu0 0.0
    %545 = vmatprep.subr.mxu0 0.0
    %546 = vmatpush1.msra.mxu0 0.0
    %547 = vmatprep.subr.mxu0 0.0
    %548 = vmatpush1.msra.mxu0 0.0
    %549 = vmatprep.subr.mxu0 0.0
    %550 = vmatpush1.msra.mxu0 0.0
    %551 = vmatprep.subr.mxu0 0.0
    %552 = vmatpush1.msra.mxu0 0.0
    %553 = vmatprep.subr.mxu0 0.0
    %554 = vmatpush1.msra.mxu0 0.0
    %555 = vmatprep.subr.mxu0 0.0
    %556 = vmatpush1.msra.mxu0 0.0
    %557 = vmatprep.subr.mxu0 0.0
    %558 = vmatpush1.msra.mxu0 0.0
    %559 = vmatprep.subr.mxu0 0.0
    %560 = vmatpush1.msra.mxu0 0.0
    %561 = vmatprep.subr.mxu0 0.0
    %562 = vmatpush1.msra.mxu0 0.0
    %563 = vmatprep.subr.mxu0 0.0
    %564 = vmatpush1.msra.mxu0 0.0
    %565 = vmatprep.subr.mxu0 0.0
    %566 = vmatpush1.msra.mxu0 0.0
    %567 = vmatprep.subr.mxu0 0.0
    %568 = vmatpush1.msra.mxu0 0.0
    %569 = vmatprep.subr.mxu0 0.0
    %570 = vmatpush1.msra.mxu0 0.0
    %571 = vmatprep.subr.mxu0 0.0
    %572 = vmatpush1.msra.mxu0 0.0
    %573 = vmatprep.subr.mxu0 0.0
    %574 = vmatpush1.msra.mxu0 0.0
    %575 = vmatprep.subr.mxu0 0.0
    %576 = vmatpush1.msra.mxu0 0.0
    %577 = vmatprep.subr.mxu0 0.0
    %578 = vmatpush1.msra.mxu0 0.0
    %579 = vmatprep.subr.mxu0 0.0
    %580 = vmatpush1.msra.mxu0 0.0
    %581 = vmatprep.subr.mxu0 0.0
    %582 = vmatpush1.msra.mxu0 0.0
    %583 = vmatprep.subr.mxu0 0.0
    %584 = vmatpush1.msra.mxu0 0.0
    %585 = vmatprep.subr.mxu0 0.0
    %586 = vmatpush1.msra.mxu0 0.0
    %587 = vmatprep.subr.mxu0 0.0
    %588 = vmatpush1.msra.mxu0 0.0
    %589 = vmatprep.subr.mxu0 0.0
    %590 = vmatpush1.msra.mxu0 0.0
    %591 = vmatprep.subr.mxu0 0.0
    %592 = vmatpush1.msra.mxu0 0.0
    %593 = vmatprep.mubr.f32.mxu0 0.0
    %594 = vmatmul.mubr.f32.gmra.mrb[0].mxu0 %v527
    %v595 = vpop.f32.mrb[0].mxu0
    %v596 = vadd.f32 0.0, %v595
    %v597 = vpop.f32.mrb[0].mxu0
    %598 = vdwg.mxu0
    %v599 = vlaneseq
    %v600 = vshrl.u32 %v599, 7
    %v601 = vsub.s32 0, %v600
    %v602 = vrot.slane %v523, %v601
    %v603 = vmul.f32 %v258, %v602
    %v604 = vmul.f32 %v261, %v602
    %v605 = vlaneseq
    %v606 = vshrl.u32 %v605, 7
    %v607 = vsub.s32 0, %v606
    %v608 = vrot.slane %v596, %v607
    %v609 = vadd.f32 %v603, %v608
    %v610 = vadd.f32 %v604, %v608
    %vm611 = vcmp.ge.f32.partialorder %v609, 0.0
    %vm612 = vcmp.ge.f32.partialorder %v610, 0.0
    %v613 = vstv %s82
    %v614 = vmul.f32 %v613, %v609
    %v615 = vmul.f32 %v613, %v610
    %v616 = vsel %vm611, %v609, %v614
    %v617 = vsel %vm612, %v610, %v615
    %618 = vst [vmem:[#allocation2] sm:$0x1] 0.0
    %619 = vst [vmem:[#allocation2 + $0x10] sm:$0x1] 0.0
    %620 = vst [vmem:[#allocation2 + $0x9] sm:$0x1] 0.0
    %621 = vst [vmem:[#allocation2 + $0x19] sm:$0x1] 0.0
    %622 = vst [vmem:[#allocation2 + $0x1] sm:$0xff] %v616
    %623 = vst [vmem:[#allocation2 + $0x11] sm:$0xff] %v617
    %v624 = vld [vmem:[#allocation2] sm:$0xff]
    %v625 = vld [vmem:[#allocation2 + $0x10] sm:$0xff]
    %v626 = vld [vmem:[#allocation2 + $0x1] sm:$0xff]
    %v627 = vld [vmem:[#allocation2 + $0x11] sm:$0xff]
    %v628 = vld [vmem:[#allocation2 + $0x2] sm:$0xff]
    %v629 = vld [vmem:[#allocation2 + $0x12] sm:$0xff]
    %632 = vrot.lane.b32.xlu0 %v624, 64
    %v633 = vpop.permute.xlu0 %632
    %634 = vrot.lane.b32.xlu0 %v625, 64
    %v635 = vpop.permute.xlu0 %634
    %640 = vrot.lane.b32.xlu0 %v626, 64
    %v641 = vpop.permute.xlu0 %640
    %642 = vrot.lane.b32.xlu0 %v627, 64
    %v643 = vpop.permute.xlu0 %642
    %648 = vrot.lane.b32.xlu0 %v628, 64
    %v649 = vpop.permute.xlu0 %648
    %650 = vrot.lane.b32.xlu0 %v629, 64
    %v651 = vpop.permute.xlu0 %650
    %vm654 = vcmask 523264
    %v655 = vsel %vm654, %v633, %v641
    %v656 = vsel %vm654, %v635, %v643
    %v657 = vsel %vm654, %v641, %v649
    %v658 = vsel %vm654, %v643, %v651
    %v659 = vpack.c.bf16 %v656, %v655
    %v660 = vpack.c.bf16 %v658, %v657
    %v661 = vld [vmem:[#allocation9] sm:$0xf]
    %v662 = vld [vmem:[#allocation9 + $0x4] sm:$0xf]
    %v663 = vld [vmem:[#allocation9 + $0x8] sm:$0xf]
    %v664 = vld [vmem:[#allocation9 + $0xc] sm:$0xf]
    %v665 = vld [vmem:[#allocation9 + $0x10] sm:$0xf]
    %v666 = vld [vmem:[#allocation9 + $0x14] sm:$0xf]
    %v667 = vld [vmem:[#allocation9 + $0x18] sm:$0xf]
    %v668 = vld [vmem:[#allocation9 + $0x1c] sm:$0xf]
    %v669 = vld [vmem:[#allocation9 + $0x20] sm:$0xf]
    %v670 = vld [vmem:[#allocation9 + $0x24] sm:$0xf]
    %v671 = vld [vmem:[#allocation9 + $0x28] sm:$0xf]
    %v672 = vld [vmem:[#allocation9 + $0x2c] sm:$0xf]
    %v673 = vld [vmem:[#allocation9 + $0x30] sm:$0xf]
    %v674 = vld [vmem:[#allocation9 + $0x34] sm:$0xf]
    %v675 = vld [vmem:[#allocation9 + $0x38] sm:$0xf]
    %v676 = vld [vmem:[#allocation9 + $0x3c] sm:$0xf]
    %v677 = vld [vmem:[#allocation9 + $0x40] sm:$0xf]
    %v678 = vld [vmem:[#allocation9 + $0x44] sm:$0xf]
    %v679 = vld [vmem:[#allocation9 + $0x48] sm:$0xf]
    %v680 = vld [vmem:[#allocation9 + $0x4c] sm:$0xf]
    %v681 = vld [vmem:[#allocation9 + $0x50] sm:$0xf]
    %v682 = vld [vmem:[#allocation9 + $0x54] sm:$0xf]
    %v683 = vld [vmem:[#allocation9 + $0x58] sm:$0xf]
    %v684 = vld [vmem:[#allocation9 + $0x5c] sm:$0xf]
    %v685 = vld [vmem:[#allocation9 + $0x60] sm:$0xf]
    %v686 = vld [vmem:[#allocation9 + $0x64] sm:$0xf]
    %v687 = vld [vmem:[#allocation9 + $0x68] sm:$0xf]
    %v688 = vld [vmem:[#allocation9 + $0x6c] sm:$0xf]
    %v689 = vld [vmem:[#allocation9 + $0x70] sm:$0xf]
    %v690 = vld [vmem:[#allocation9 + $0x74] sm:$0xf]
    %v691 = vld [vmem:[#allocation9 + $0x78] sm:$0xf]
    %v692 = vld [vmem:[#allocation9 + $0x7c] sm:$0xf]
    %v725 = vunpack.c.l.b16 %v661
    %v726 = vunpack.c.l.b16 %v662
    %v727 = vunpack.c.l.b16 %v663
    %v728 = vunpack.c.l.b16 %v664
    %v729 = vunpack.c.l.b16 %v665
    %v730 = vunpack.c.l.b16 %v666
    %v731 = vunpack.c.l.b16 %v667
    %v732 = vunpack.c.l.b16 %v668
    %v733 = vunpack.c.l.b16 %v669
    %v734 = vunpack.c.l.b16 %v670
    %v735 = vunpack.c.l.b16 %v671
    %v736 = vunpack.c.l.b16 %v672
    %v737 = vunpack.c.l.b16 %v673
    %v738 = vunpack.c.l.b16 %v674
    %v739 = vunpack.c.l.b16 %v675
    %v740 = vunpack.c.l.b16 %v676
    %v741 = vunpack.c.l.b16 %v677
    %v742 = vunpack.c.l.b16 %v678
    %v743 = vunpack.c.l.b16 %v679
    %v744 = vunpack.c.l.b16 %v680
    %v745 = vunpack.c.l.b16 %v681
    %v746 = vunpack.c.l.b16 %v682
    %v747 = vunpack.c.l.b16 %v683
    %v748 = vunpack.c.l.b16 %v684
    %v749 = vunpack.c.l.b16 %v685
    %v750 = vunpack.c.l.b16 %v686
    %v751 = vunpack.c.l.b16 %v687
    %v752 = vunpack.c.l.b16 %v688
    %v753 = vunpack.c.l.b16 %v689
    %v754 = vunpack.c.l.b16 %v690
    %v755 = vunpack.c.l.b16 %v691
    %v756 = vunpack.c.l.b16 %v692
    %v757 = vpack.c.b16 %v726, %v725
    %v758 = vpack.c.b16 %v728, %v727
    %v759 = vpack.c.b16 %v730, %v729
    %v760 = vpack.c.b16 %v732, %v731
    %v761 = vpack.c.b16 %v734, %v733
    %v762 = vpack.c.b16 %v736, %v735
    %v763 = vpack.c.b16 %v738, %v737
    %v764 = vpack.c.b16 %v740, %v739
    %v765 = vpack.c.b16 %v742, %v741
    %v766 = vpack.c.b16 %v744, %v743
    %v767 = vpack.c.b16 %v746, %v745
    %v768 = vpack.c.b16 %v748, %v747
    %v769 = vpack.c.b16 %v750, %v749
    %v770 = vpack.c.b16 %v752, %v751
    %v771 = vpack.c.b16 %v754, %v753
    %v772 = vpack.c.b16 %v756, %v755
    %789 = vmatprep.subr.bf16.mxu0 0
    %790 = vmatpush1.bf16.msra.mxu0 %v757
    %791 = vmatprep.subr.bf16.mxu0 0
    %792 = vmatpush1.bf16.msra.mxu0 %v758
    %793 = vmatprep.subr.bf16.mxu0 0
    %794 = vmatpush1.bf16.msra.mxu0 %v759
    %795 = vmatprep.subr.bf16.mxu0 0
    %796 = vmatpush1.bf16.msra.mxu0 %v760
    %797 = vmatprep.subr.bf16.mxu0 0
    %798 = vmatpush1.bf16.msra.mxu0 %v761
    %799 = vmatprep.subr.bf16.mxu0 0
    %800 = vmatpush1.bf16.msra.mxu0 %v762
    %801 = vmatprep.subr.bf16.mxu0 0
    %802 = vmatpush1.bf16.msra.mxu0 %v763
    %803 = vmatprep.subr.bf16.mxu0 0
    %804 = vmatpush1.bf16.msra.mxu0 %v764
    %805 = vmatprep.subr.bf16.mxu0 0
    %806 = vmatpush1.bf16.msra.mxu0 %v765
    %807 = vmatprep.subr.bf16.mxu0 0
    %808 = vmatpush1.bf16.msra.mxu0 %v766
    %809 = vmatprep.subr.bf16.mxu0 0
    %810 = vmatpush1.bf16.msra.mxu0 %v767
    %811 = vmatprep.subr.bf16.mxu0 0
    %812 = vmatpush1.bf16.msra.mxu0 %v768
    %813 = vmatprep.subr.bf16.mxu0 0
    %814 = vmatpush1.bf16.msra.mxu0 %v769
    %815 = vmatprep.subr.bf16.mxu0 0
    %816 = vmatpush1.bf16.msra.mxu0 %v770
    %817 = vmatprep.subr.bf16.mxu0 0
    %818 = vmatpush1.bf16.msra.mxu0 %v771
    %819 = vmatprep.subr.bf16.mxu0 0
    %820 = vmatpush1.bf16.msra.mxu0 %v772
    %821 = vmatprep.mubr.bf16.mxu0 %v660
    %822 = vmatmul.mubr.bf16.gmra.mrb[0].mxu0 %v659
    %v823 = vpop.f32.mrb[0].mxu0
    %v824 = vadd.f32 0.0, %v823
    %v825 = vpop.f32.mrb[0].mxu0
    %v826 = vpop.f32.mrb[0].mxu0
    %v827 = vadd.f32 0.0, %v826
    %v828 = vpop.f32.mrb[0].mxu0
    %829 = vdwg.mxu0
    %v830 = vadd.f32 %v824, %v827
    %v831 = vrot.slane %v830, 4
    %v832 = vadd.f32 %v830, %v831
    %v833 = vrot.slane %v832, 2
    %v834 = vadd.f32 %v832, %v833
    %v835 = vrot.slane %v834, 1
    %v836 = vadd.f32 %v834, %v835
    %v837 = vmul.f32 %v824, %v824
    %v838 = vmul.f32 %v827, %v827
    %v839 = vadd.f32 %v837, %v838
    %v840 = vrot.slane %v839, 4
    %v841 = vadd.f32 %v839, %v840
    %v842 = vrot.slane %v841, 2
    %v843 = vadd.f32 %v841, %v842
    %v844 = vrot.slane %v843, 1
    %v845 = vadd.f32 %v843, %v844
    %v846 = vld [vmem:[%s4] sm:$0xff]
    %v847 = vld [vmem:[%s4 + $0x8] sm:$0xff]
    %v848 = vld [vmem:[%s4 + $0x10] sm:$0xff]
    %v849 = vld [vmem:[%s4 + $0x18] sm:$0xff]
    %v850 = vld [vmem:[%s4 + $0x20] sm:$0xff]
    %v851 = vld [vmem:[%s4 + $0x28] sm:$0xff]
    %v852 = vld [vmem:[%s4 + $0x30] sm:$0xff]
    %v853 = vld [vmem:[%s4 + $0x38] sm:$0xff]
    %v854 = vld [vmem:[%s4 + $0x40] sm:$0xff]
    %v855 = vld [vmem:[%s4 + $0x48] sm:$0xff]
    %v856 = vld [vmem:[%s4 + $0x50] sm:$0xff]
    %v857 = vld [vmem:[%s4 + $0x58] sm:$0xff]
    %v858 = vld [vmem:[%s4 + $0x60] sm:$0xff]
    %v859 = vld [vmem:[%s4 + $0x68] sm:$0xff]
    %v860 = vld [vmem:[%s4 + $0x70] sm:$0xff]
    %v861 = vld [vmem:[%s4 + $0x78] sm:$0xff]
    %862 = vmatprep.subr.mxu0 0.0
    %863 = vmatpush1.msra.mxu0 %v846
    %864 = vmatprep.subr.mxu0 0.0
    %865 = vmatpush1.msra.mxu0 %v847
    %866 = vmatprep.subr.mxu0 0.0
    %867 = vmatpush1.msra.mxu0 %v848
    %868 = vmatprep.subr.mxu0 0.0
    %869 = vmatpush1.msra.mxu0 %v849
    %870 = vmatprep.subr.mxu0 0.0
    %871 = vmatpush1.msra.mxu0 %v850
    %872 = vmatprep.subr.mxu0 0.0
    %873 = vmatpush1.msra.mxu0 %v851
    %874 = vmatprep.subr.mxu0 0.0
    %875 = vmatpush1.msra.mxu0 %v852
    %876 = vmatprep.subr.mxu0 0.0
    %877 = vmatpush1.msra.mxu0 %v853
    %878 = vmatprep.subr.mxu0 0.0
    %879 = vmatpush1.msra.mxu0 %v854
    %880 = vmatprep.subr.mxu0 0.0
    %881 = vmatpush1.msra.mxu0 %v855
    %882 = vmatprep.subr.mxu0 0.0
    %883 = vmatpush1.msra.mxu0 %v856
    %884 = vmatprep.subr.mxu0 0.0
    %885 = vmatpush1.msra.mxu0 %v857
    %886 = vmatprep.subr.mxu0 0.0
    %887 = vmatpush1.msra.mxu0 %v858
    %888 = vmatprep.subr.mxu0 0.0
    %889 = vmatpush1.msra.mxu0 %v859
    %890 = vmatprep.subr.mxu0 0.0
    %891 = vmatpush1.msra.mxu0 %v860
    %892 = vmatprep.subr.mxu0 0.0
    %893 = vmatpush1.msra.mxu0 %v861
    %894 = vmatprep.subr.mxu0 0.0
    %895 = vmatpush1.msra.mxu0 0.0
    %896 = vmatprep.subr.mxu0 0.0
    %897 = vmatpush1.msra.mxu0 0.0
    %898 = vmatprep.subr.mxu0 0.0
    %899 = vmatpush1.msra.mxu0 0.0
    %900 = vmatprep.subr.mxu0 0.0
    %901 = vmatpush1.msra.mxu0 0.0
    %902 = vmatprep.subr.mxu0 0.0
    %903 = vmatpush1.msra.mxu0 0.0
    %904 = vmatprep.subr.mxu0 0.0
    %905 = vmatpush1.msra.mxu0 0.0
    %906 = vmatprep.subr.mxu0 0.0
    %907 = vmatpush1.msra.mxu0 0.0
    %908 = vmatprep.subr.mxu0 0.0
    %909 = vmatpush1.msra.mxu0 0.0
    %910 = vmatprep.subr.mxu0 0.0
    %911 = vmatpush1.msra.mxu0 0.0
    %912 = vmatprep.subr.mxu0 0.0
    %913 = vmatpush1.msra.mxu0 0.0
    %914 = vmatprep.subr.mxu0 0.0
    %915 = vmatpush1.msra.mxu0 0.0
    %916 = vmatprep.subr.mxu0 0.0
    %917 = vmatpush1.msra.mxu0 0.0
    %918 = vmatprep.subr.mxu0 0.0
    %919 = vmatpush1.msra.mxu0 0.0
    %920 = vmatprep.subr.mxu0 0.0
    %921 = vmatpush1.msra.mxu0 0.0
    %922 = vmatprep.subr.mxu0 0.0
    %923 = vmatpush1.msra.mxu0 0.0
    %924 = vmatprep.subr.mxu0 0.0
    %925 = vmatpush1.msra.mxu0 0.0
    %926 = vmatprep.mubr.f32.mxu0 0.0
    %927 = vmatmul.mubr.f32.gmra.mrb[0].mxu0 %v836
    %v928 = vpop.f32.mrb[0].mxu0
    %v929 = vadd.f32 0.0, %v928
    %v930 = vpop.f32.mrb[0].mxu0
    %931 = vdwg.mxu0
    %932 = vmatprep.subr.mxu0 0.0
    %933 = vmatpush1.msra.mxu0 %v846
    %934 = vmatprep.subr.mxu0 0.0
    %935 = vmatpush1.msra.mxu0 %v847
    %936 = vmatprep.subr.mxu0 0.0
    %937 = vmatpush1.msra.mxu0 %v848
    %938 = vmatprep.subr.mxu0 0.0
    %939 = vmatpush1.msra.mxu0 %v849
    %940 = vmatprep.subr.mxu0 0.0
    %941 = vmatpush1.msra.mxu0 %v850
    %942 = vmatprep.subr.mxu0 0.0
    %943 = vmatpush1.msra.mxu0 %v851
    %944 = vmatprep.subr.mxu0 0.0
    %945 = vmatpush1.msra.mxu0 %v852
    %946 = vmatprep.subr.mxu0 0.0
    %947 = vmatpush1.msra.mxu0 %v853
    %948 = vmatprep.subr.mxu0 0.0
    %949 = vmatpush1.msra.mxu0 %v854
    %950 = vmatprep.subr.mxu0 0.0
    %951 = vmatpush1.msra.mxu0 %v855
    %952 = vmatprep.subr.mxu0 0.0
    %953 = vmatpush1.msra.mxu0 %v856
    %954 = vmatprep.subr.mxu0 0.0
    %955 = vmatpush1.msra.mxu0 %v857
    %956 = vmatprep.subr.mxu0 0.0
    %957 = vmatpush1.msra.mxu0 %v858
    %958 = vmatprep.subr.mxu0 0.0
    %959 = vmatpush1.msra.mxu0 %v859
    %960 = vmatprep.subr.mxu0 0.0
    %961 = vmatpush1.msra.mxu0 %v860
    %962 = vmatprep.subr.mxu0 0.0
    %963 = vmatpush1.msra.mxu0 %v861
    %964 = vmatprep.subr.mxu0 0.0
    %965 = vmatpush1.msra.mxu0 0.0
    %966 = vmatprep.subr.mxu0 0.0
    %967 = vmatpush1.msra.mxu0 0.0
    %968 = vmatprep.subr.mxu0 0.0
    %969 = vmatpush1.msra.mxu0 0.0
    %970 = vmatprep.subr.mxu0 0.0
    %971 = vmatpush1.msra.mxu0 0.0
    %972 = vmatprep.subr.mxu0 0.0
    %973 = vmatpush1.msra.mxu0 0.0
    %974 = vmatprep.subr.mxu0 0.0
    %975 = vmatpush1.msra.mxu0 0.0
    %976 = vmatprep.subr.mxu0 0.0
    %977 = vmatpush1.msra.mxu0 0.0
    %978 = vmatprep.subr.mxu0 0.0
    %979 = vmatpush1.msra.mxu0 0.0
    %980 = vmatprep.subr.mxu0 0.0
    %981 = vmatpush1.msra.mxu0 0.0
    %982 = vmatprep.subr.mxu0 0.0
    %983 = vmatpush1.msra.mxu0 0.0
    %984 = vmatprep.subr.mxu0 0.0
    %985 = vmatpush1.msra.mxu0 0.0
    %986 = vmatprep.subr.mxu0 0.0
    %987 = vmatpush1.msra.mxu0 0.0
    %988 = vmatprep.subr.mxu0 0.0
    %989 = vmatpush1.msra.mxu0 0.0
    %990 = vmatprep.subr.mxu0 0.0
    %991 = vmatpush1.msra.mxu0 0.0
    %992 = vmatprep.subr.mxu0 0.0
    %993 = vmatpush1.msra.mxu0 0.0
    %994 = vmatprep.subr.mxu0 0.0
    %995 = vmatpush1.msra.mxu0 0.0
    %996 = vmatprep.mubr.f32.mxu0 0.0
    %997 = vmatmul.mubr.f32.gmra.mrb[0].mxu0 %v845
    %v998 = vpop.f32.mrb[0].mxu0
    %v999 = vadd.f32 0.0, %v998
    %v1000 = vpop.f32.mrb[0].mxu0
    %1001 = vdwg.mxu0
    %v1002 = vmul.f32 %v929, 0.001953125
    %v1003 = vmul.f32 %v999, 0.001953125
    %v1004 = vmul.f32 %v1002, %v1002
    %v1005 = vsub.f32 %v1003, %v1004
    %v1006 = vld [vmem:[%s8] sm:$0x1]
    %v1007 = vadd.f32 %v1005, 1e-05
    %v1008 = vrsqrt.pop %v1007
    %v1009 = vmul.f32 %v1006, %v1008
    %v1010 = vld [vmem:[%s9] sm:$0x1]
    %v1011 = vmul.f32 %v1002, %v1009
    %v1012 = vsub.f32 %v1010, %v1011
    %v1013 = vld [vmem:[%s5] sm:$0xf]
    %v1015 = vsel %vm448, %v1009, 0
    %v1018 = vsel %vm452, %v1013, 0
    %1020 = vmatprep.subr.mxu0 0.0
    %1021 = vmatpush1.msra.mxu0 %v1018
    %1022 = vmatprep.subr.mxu0 0.0
    %1023 = vmatpush1.msra.mxu0 0.0
    %1024 = vmatprep.subr.mxu0 0.0
    %1025 = vmatpush1.msra.mxu0 0.0
    %1026 = vmatprep.subr.mxu0 0.0
    %1027 = vmatpush1.msra.mxu0 0.0
    %1028 = vmatprep.subr.mxu0 0.0
    %1029 = vmatpush1.msra.mxu0 0.0
    %1030 = vmatprep.subr.mxu0 0.0
    %1031 = vmatpush1.msra.mxu0 0.0
    %1032 = vmatprep.subr.mxu0 0.0
    %1033 = vmatpush1.msra.mxu0 0.0
    %1034 = vmatprep.subr.mxu0 0.0
    %1035 = vmatpush1.msra.mxu0 0.0
    %1036 = vmatprep.subr.mxu0 0.0
    %1037 = vmatpush1.msra.mxu0 0.0
    %1038 = vmatprep.subr.mxu0 0.0
    %1039 = vmatpush1.msra.mxu0 0.0
    %1040 = vmatprep.subr.mxu0 0.0
    %1041 = vmatpush1.msra.mxu0 0.0
    %1042 = vmatprep.subr.mxu0 0.0
    %1043 = vmatpush1.msra.mxu0 0.0
    %1044 = vmatprep.subr.mxu0 0.0
    %1045 = vmatpush1.msra.mxu0 0.0
    %1046 = vmatprep.subr.mxu0 0.0
    %1047 = vmatpush1.msra.mxu0 0.0
    %1048 = vmatprep.subr.mxu0 0.0
    %1049 = vmatpush1.msra.mxu0 0.0
    %1050 = vmatprep.subr.mxu0 0.0
    %1051 = vmatpush1.msra.mxu0 0.0
    %1052 = vmatprep.subr.mxu0 0.0
    %1053 = vmatpush1.msra.mxu0 0.0
    %1054 = vmatprep.subr.mxu0 0.0
    %1055 = vmatpush1.msra.mxu0 0.0
    %1056 = vmatprep.subr.mxu0 0.0
    %1057 = vmatpush1.msra.mxu0 0.0
    %1058 = vmatprep.subr.mxu0 0.0
    %1059 = vmatpush1.msra.mxu0 0.0
    %1060 = vmatprep.subr.mxu0 0.0
    %1061 = vmatpush1.msra.mxu0 0.0
    %1062 = vmatprep.subr.mxu0 0.0
    %1063 = vmatpush1.msra.mxu0 0.0
    %1064 = vmatprep.subr.mxu0 0.0
    %1065 = vmatpush1.msra.mxu0 0.0
    %1066 = vmatprep.subr.mxu0 0.0
    %1067 = vmatpush1.msra.mxu0 0.0
    %1068 = vmatprep.subr.mxu0 0.0
    %1069 = vmatpush1.msra.mxu0 0.0
    %1070 = vmatprep.subr.mxu0 0.0
    %1071 = vmatpush1.msra.mxu0 0.0
    %1072 = vmatprep.subr.mxu0 0.0
    %1073 = vmatpush1.msra.mxu0 0.0
    %1074 = vmatprep.subr.mxu0 0.0
    %1075 = vmatpush1.msra.mxu0 0.0
    %1076 = vmatprep.subr.mxu0 0.0
    %1077 = vmatpush1.msra.mxu0 0.0
    %1078 = vmatprep.subr.mxu0 0.0
    %1079 = vmatpush1.msra.mxu0 0.0
    %1080 = vmatprep.subr.mxu0 0.0
    %1081 = vmatpush1.msra.mxu0 0.0
    %1082 = vmatprep.subr.mxu0 0.0
    %1083 = vmatpush1.msra.mxu0 0.0
    %1084 = vmatprep.mubr.f32.mxu0 0.0
    %1085 = vmatmul.mubr.f32.gmra.mrb[0].mxu0 %v1015
    %v1086 = vpop.f32.mrb[0].mxu0
    %v1087 = vadd.f32 0.0, %v1086
    %v1088 = vpop.f32.mrb[0].mxu0
    %1089 = vdwg.mxu0
    %v1091 = vsel %vm448, %v1012, 0
    %1093 = vmatprep.subr.mxu0 0.0
    %1094 = vmatpush1.msra.mxu0 %v1018
    %1095 = vmatprep.subr.mxu0 0.0
    %1096 = vmatpush1.msra.mxu0 0.0
    %1097 = vmatprep.subr.mxu0 0.0
    %1098 = vmatpush1.msra.mxu0 0.0
    %1099 = vmatprep.subr.mxu0 0.0
    %1100 = vmatpush1.msra.mxu0 0.0
    %1101 = vmatprep.subr.mxu0 0.0
    %1102 = vmatpush1.msra.mxu0 0.0
    %1103 = vmatprep.subr.mxu0 0.0
    %1104 = vmatpush1.msra.mxu0 0.0
    %1105 = vmatprep.subr.mxu0 0.0
    %1106 = vmatpush1.msra.mxu0 0.0
    %1107 = vmatprep.subr.mxu0 0.0
    %1108 = vmatpush1.msra.mxu0 0.0
    %1109 = vmatprep.subr.mxu0 0.0
    %1110 = vmatpush1.msra.mxu0 0.0
    %1111 = vmatprep.subr.mxu0 0.0
    %1112 = vmatpush1.msra.mxu0 0.0
    %1113 = vmatprep.subr.mxu0 0.0
    %1114 = vmatpush1.msra.mxu0 0.0
    %1115 = vmatprep.subr.mxu0 0.0
    %1116 = vmatpush1.msra.mxu0 0.0
    %1117 = vmatprep.subr.mxu0 0.0
    %1118 = vmatpush1.msra.mxu0 0.0
    %1119 = vmatprep.subr.mxu0 0.0
    %1120 = vmatpush1.msra.mxu0 0.0
    %1121 = vmatprep.subr.mxu0 0.0
    %1122 = vmatpush1.msra.mxu0 0.0
    %1123 = vmatprep.subr.mxu0 0.0
    %1124 = vmatpush1.msra.mxu0 0.0
    %1125 = vmatprep.subr.mxu0 0.0
    %1126 = vmatpush1.msra.mxu0 0.0
    %1127 = vmatprep.subr.mxu0 0.0
    %1128 = vmatpush1.msra.mxu0 0.0
    %1129 = vmatprep.subr.mxu0 0.0
    %1130 = vmatpush1.msra.mxu0 0.0
    %1131 = vmatprep.subr.mxu0 0.0
    %1132 = vmatpush1.msra.mxu0 0.0
    %1133 = vmatprep.subr.mxu0 0.0
    %1134 = vmatpush1.msra.mxu0 0.0
    %1135 = vmatprep.subr.mxu0 0.0
    %1136 = vmatpush1.msra.mxu0 0.0
    %1137 = vmatprep.subr.mxu0 0.0
    %1138 = vmatpush1.msra.mxu0 0.0
    %1139 = vmatprep.subr.mxu0 0.0
    %1140 = vmatpush1.msra.mxu0 0.0
    %1141 = vmatprep.subr.mxu0 0.0
    %1142 = vmatpush1.msra.mxu0 0.0
    %1143 = vmatprep.subr.mxu0 0.0
    %1144 = vmatpush1.msra.mxu0 0.0
    %1145 = vmatprep.subr.mxu0 0.0
    %1146 = vmatpush1.msra.mxu0 0.0
    %1147 = vmatprep.subr.mxu0 0.0
    %1148 = vmatpush1.msra.mxu0 0.0
    %1149 = vmatprep.subr.mxu0 0.0
    %1150 = vmatpush1.msra.mxu0 0.0
    %1151 = vmatprep.subr.mxu0 0.0
    %1152 = vmatpush1.msra.mxu0 0.0
    %1153 = vmatprep.subr.mxu0 0.0
    %1154 = vmatpush1.msra.mxu0 0.0
    %1155 = vmatprep.subr.mxu0 0.0
    %1156 = vmatpush1.msra.mxu0 0.0
    %1157 = vmatprep.mubr.f32.mxu0 0.0
    %1158 = vmatmul.mubr.f32.gmra.mrb[0].mxu0 %v1091
    %v1159 = vpop.f32.mrb[0].mxu0
    %v1160 = vadd.f32 0.0, %v1159
    %v1161 = vpop.f32.mrb[0].mxu0
    %1162 = vdwg.mxu0
    %v1163 = vlaneseq
    %v1164 = vshrl.u32 %v1163, 7
    %v1165 = vsub.s32 0, %v1164
    %v1166 = vrot.slane %v1087, %v1165
    %v1167 = vmul.f32 %v824, %v1166
    %v1168 = vmul.f32 %v827, %v1166
    %v1169 = vlaneseq
    %v1170 = vshrl.u32 %v1169, 7
    %v1171 = vsub.s32 0, %v1170
    %v1172 = vrot.slane %v1160, %v1171
    %v1173 = vadd.f32 %v1167, %v1172
    %v1174 = vadd.f32 %v1168, %v1172
    %v1175 = vld [vmem:[#allocation7] sm:$0xff]
    %v1176 = vld [vmem:[#allocation7 + $0x8] sm:$0xff]
    %v1177 = vadd.f32 %v1173, %v1175
    %v1178 = vadd.f32 %v1174, %v1176
    %vm1179 = vcmp.ge.f32.partialorder %v1177, 0.0
    %vm1180 = vcmp.ge.f32.partialorder %v1178, 0.0
    %v1181 = vmul.f32 %v613, %v1177
    %v1182 = vmul.f32 %v613, %v1178
    %v1183 = vsel %vm1179, %v1177, %v1181
    %v1184 = vsel %vm1180, %v1178, %v1182
    %1185 = vst [vmem:[#allocation10] sm:$0xff] %v1183
    %1186 = vst [vmem:[#allocation10 + $0x8] sm:$0xff] %v1184
    // Predicated region
    $region58: #{tpu_custom_call.1} parent=1 // pred_check
      _
    $region59: #{tpu_custom_call.1} parent=1 // pred_check_branch
      %1188 = sbr.rel (0) target = $region61
    $region60: #{tpu_custom_call.1} parent=1 // pred_region
      %s1190 = ssub.s32 256, 256
      %1191 = vsyncadd [#allocation6], %s1190
      %s1192 = sshll.u32 [#allocation10], 4
      %s1193 = int_to_ptr.vmem [resolvable:$true] %s1192
      %1198 = dma.vmem_to_hbm [thread:$0]  %s1193, 256, %s11, [#allocation6], 128, 128, 8
    $region61: #{tpu_custom_call.1} parent=1 // pred_fallthru
      _
    // Predicated region
    $region62: #{tpu_custom_call.1} parent=1 // pred_check
      _
    $region63: #{tpu_custom_call.1} parent=1 // pred_check_branch
      %1200 = sbr.rel (0) target = $region65
    $region64: #{tpu_custom_call.1} parent=1 // pred_region
      %1201 = dma.done [#allocation6], 256
    $region65: #{tpu_custom_call.1} parent=1 // pred_fallthru
      _
    %1202 = vsyncpa [#allocation5], 1
    %1203 = vsyncpa [#allocation8], 1
    %1204 = vsyncpa [#allocation6], 1

</llo_original>
